<compile_context>
chip_gen: v6e
topology: v6e:2x2x1
jax: 0.10.0
libtpu: 0.0.40
codegen_flags: <defaults>
</compile_context>

<pallas_src>
import functools

import jax
import jax.numpy as jnp
from jax.experimental import pallas as pl
from jax.experimental.pallas import tpu as pltpu


def _swish_kernel(x_ref, o_ref):
    x = x_ref[...]
    xf = x.astype(jnp.float32)
    # sigmoid(x) == 0.5 * (tanh(0.5 * x) + 1): a single EUP transcendental
    # (tanh) riding the otherwise-idle EUP slot; the kernel stays HBM-bound.
    sig = 0.5 * (jnp.tanh(xf * 0.5) + 1.0)
    o_ref[...] = (xf * sig).astype(o_ref.dtype)


_LANE = 128
# Row-width candidates, widest first -> big contiguous DMAs, unmasked
# lane-dense stores.
_C_CANDIDATES = (4096, 2048, 1024, 512, 256, 128)


@functools.lru_cache(maxsize=None)
def _chip_config():
    """Per-generation tile size / scoped-VMEM budget (trace-time constants)."""
    try:
        kind = jax.devices()[0].device_kind.lower()
    except Exception:  # pragma: no cover - e.g. no backend yet
        kind = ""
    if "v7" in kind:
        # 4 x 8 MiB (double-buffered in+out) = 32 MiB; 48 MiB scoped limit
        # leaves headroom under v7x's 64 MiB physical VMEM.
        return {"tile_bytes": 8 << 20, "vmem_limit": 48 << 20, "two_tc": True}
    if "v6" in kind:
        # 4 x 6 MiB = 24 MiB; physical VMEM 128 MiB, default scoped 32 MiB.
        return {"tile_bytes": 6 << 20, "vmem_limit": 64 << 20, "two_tc": False}
    if "v5" in kind:
        # Keep modest tiles on v5e (default scoped VMEM is only 16 MiB).
        return {"tile_bytes": 3 << 20, "vmem_limit": 24 << 20, "two_tc": False}
    # Unknown / older chip: conservative defaults.
    return {"tile_bytes": 2 << 20, "vmem_limit": None, "two_tc": False}


def _sublane_multiple(dtype) -> int:
    # Sublane packing: 8 rows for 4-byte dtypes, 16 for bf16/f16, 32 for int8/fp8.
    itemsize = jnp.dtype(dtype).itemsize
    return max(8, 32 // max(itemsize, 1))


def _pick_width(n: int, sub: int):
    """Widest C (multiple of 128) dividing n with rows >= sublane packing.

    Falls back to the widest dividing C if no candidate gives full sublane
    occupancy (tiny tensors).  Returns None if n is not a multiple of 128.
    """
    fallback = None
    for c in _C_CANDIDATES:
        if n % c == 0:
            if fallback is None:
                fallback = c
            if n // c >= sub:
                return c
    return fallback


def _swish_2d(x2d: jax.Array, cfg) -> jax.Array:
    """Run the Pallas kernel over a [rows, C] slab (C a multiple of 128)."""
    rows, C = x2d.shape
    dtype = x2d.dtype
    itemsize = jnp.dtype(dtype).itemsize
    sub = _sublane_multiple(dtype)

    # Block rows: target the per-generation tile size, aligned to sublane packing.
    target_rows = max(sub, (cfg["tile_bytes"] // (C * itemsize)) // sub * sub)
    if rows <= target_rows:
        block_rows = rows  # single full-extent block (always a legal block shape)
        grid = (1,)
    else:
        block_rows = target_rows
        grid = (pl.cdiv(rows, block_rows),)  # Pallas masks the partial last block

    if cfg["two_tc"] and grid[0] >= 2:
        # v7x: split grid steps across both TensorCores' DMA engines.
        # TODO(synk): measure with xprof whether one TC already saturates HBM.
        dim_sem = (pltpu.CORE_PARALLEL,)
    else:
        dim_sem = ("parallel",)  # measured no-op vs "arbitrary" on single-TC chips

    return pl.pallas_call(
        _swish_kernel,
        out_shape=jax.ShapeDtypeStruct((rows, C), dtype),
        grid=grid,
        in_specs=[pl.BlockSpec((block_rows, C), lambda i: (i, 0))],
        out_specs=pl.BlockSpec((block_rows, C), lambda i: (i, 0)),
        compiler_params=pltpu.CompilerParams(
            dimension_semantics=dim_sem,
            vmem_limit_bytes=cfg["vmem_limit"],
        ),
    )(x2d)


# No donation / aliasing: the op returns a fresh array (one HBM read + one
# write, the roofline minimum).  Aliasing a non-donated jit argument would
# only insert a hidden defensive copy.
@jax.jit
def swish_pallas(x: jax.Array) -> jax.Array:
    """Swish activation: x * sigmoid(x), computed in a Pallas TPU kernel."""
    orig_shape = x.shape
    dtype = x.dtype
    n = x.size
    if n == 0:
        return x

    cfg = _chip_config()
    sub = _sublane_multiple(dtype)
    x_flat = x.reshape(-1)

    C = _pick_width(n, sub)
    if C is not None:
        # Common case: zero-copy reshape into a lane-dense slab, one kernel.
        out2d = _swish_2d(x_flat.reshape(n // C, C), cfg)
        return out2d.reshape(orig_shape)

    # Rare ragged case (n not a multiple of 128): run the kernel on the
    # largest 1024-divisible prefix and compute the <1024-element tail in
    # plain JAX, then stitch.  No full-array pad/slice passes.
    chunk = 8 * _LANE
    n_main = (n // chunk) * chunk
    pieces = []
    if n_main > 0:
        head = jax.lax.slice(x_flat, (0,), (n_main,))
        c_head = _pick_width(n_main, sub)
        pieces.append(_swish_2d(head.reshape(n_main // c_head, c_head), cfg).reshape(-1))
    tail = jax.lax.slice(x_flat, (n_main,), (n,))
    tail_f = tail.astype(jnp.float32)
    pieces.append((tail_f * jax.nn.sigmoid(tail_f)).astype(dtype))
    out_flat = pieces[0] if len(pieces) == 1 else jnp.concatenate(pieces)
    return out_flat.reshape(orig_shape)


if __name__ == "__main__":
    key = jax.random.PRNGKey(0)
    # Small NCHW input consistent with typical conv-net usage of Swish.
    x = jax.random.normal(key, (2, 4, 16, 16), dtype=jnp.float32)

    out = swish_pallas(x)
    out = jax.block_until_ready(out)

    # Correctness check against plain-JAX reference.
    ref = x * jax.nn.sigmoid(x)
    assert out.shape == x.shape and out.dtype == x.dtype
    assert jnp.allclose(out, ref, atol=1e-5, rtol=1e-5)

    print("KERNEL_OK")
</pallas_src>

<mosaic_0001>
module attributes {stable_mosaic.version = 11 : i64} {
  func.func @_swish_kernel(%arg0: i32, %arg1: memref<8x256xf32, #tpu.memory_space<vmem>>, %arg2: memref<8x256xf32, #tpu.memory_space<vmem>>) attributes {dimension_semantics = [#tpu.dimension_semantics<parallel>], iteration_bounds = array<i64: 1>, scalar_prefetch = 0 : i64, scratch_operands = 0 : i64, tpu.core_type = #tpu.core_type<tc>, window_params = [{transform_indices = @transform_0, window_bounds = array<i64: 8, 256>}, {transform_indices = @transform_1, window_bounds = array<i64: 8, 256>}]} {
    %c0 = arith.constant 0 : index
    %c0_0 = arith.constant 0 : index
    %0 = vector.load %arg1[%c0, %c0_0] : memref<8x256xf32, #tpu.memory_space<vmem>>, vector<8x256xf32>
    %cst = arith.constant 5.000000e-01 : f32
    %1 = vector.broadcast %cst : f32 to vector<8x256xf32>
    %2 = arith.mulf %0, %1 : vector<8x256xf32>
    %3 = math.tanh %2 : vector<8x256xf32>
    %cst_1 = arith.constant 1.000000e+00 : f32
    %4 = vector.broadcast %cst_1 : f32 to vector<8x256xf32>
    %5 = arith.addf %3, %4 : vector<8x256xf32>
    %cst_2 = arith.constant 5.000000e-01 : f32
    %6 = vector.broadcast %cst_2 : f32 to vector<8x256xf32>
    %7 = arith.mulf %6, %5 : vector<8x256xf32>
    %8 = arith.mulf %0, %7 : vector<8x256xf32>
    %c0_3 = arith.constant 0 : index
    %c0_4 = arith.constant 0 : index
    %9 = vector.load %arg2[%c0_3, %c0_4] : memref<8x256xf32, #tpu.memory_space<vmem>>, vector<8x256xf32>
    tpu.vector_store %arg2[%c0_3, %c0_4], %8 {strides = array<i32>} : memref<8x256xf32, #tpu.memory_space<vmem>>, vector<8x256xf32>,
    return
  }
  func.func @transform_0(%arg0: i32) -> (i32, i32) {
    %c0_i32 = arith.constant 0 : i32
    %c0_i32_0 = arith.constant 0 : i32
    return %arg0, %c0_i32 : i32, i32
  }
  func.func @transform_1(%arg0: i32) -> (i32, i32) {
    %c0_i32 = arith.constant 0 : i32
    %c0_i32_0 = arith.constant 0 : i32
    return %arg0, %c0_i32 : i32, i32
  }
}

</mosaic_0001>

<llo_original>
// kernel: swish_pallas.1
$region0: #{swish_pallas.1}
  #allocation0 [shape = 'u32[]', space=smem, size = 0x4, offset = 0x4, fixed_abs, tag = 'smem constant byte address 0x4 - core index']
  #allocation1 [shape = 'u32[144,128]{1,0:T(1,128)}', space=vmem, size = 0x12000, scoped, tag = 'internal scratch']
  %s0 = inlined_call_operand.vmem [shape: f32[8,256], index: 0, kind: input, shape index: {}]
  %s1 = inlined_call_operand.vmem [shape: f32[8,256], index: 1, kind: output, shape index: {}]
  %s2 = sld [smem:[#allocation0]]
  $region14: #{swish_pallas.1} parent=0
    _
  %s4 = ssub.s32 1, %s2
  %s5 = scalar_select 0, %s4, %s2
  // Predicated region
  $region2: #{swish_pallas.1} parent=0 // pred_check
    _
  $region3: #{swish_pallas.1} parent=0 // pred_check_branch
    %7 = sbr.rel (0) target = $region5
  $region4: #{swish_pallas.1} parent=0 // pred_region
    _
  $region5: #{swish_pallas.1} parent=0 // pred_fallthru
    _
  %v8 = vld [vmem:[%s0] sm:$0xff]
  %v9 = vld [vmem:[%s0 + $0x8] sm:$0xff]
  %v10 = vmul.f32 %v8, 0.5
  %v11 = vmul.f32 %v9, 0.5
  %v12 = vtanh.pop %v10
  %v13 = vtanh.pop %v11
  %v14 = vadd.f32 %v12, 1.0
  %v15 = vadd.f32 %v13, 1.0
  %v16 = vmul.f32 %v14, 0.5
  %v17 = vmul.f32 %v15, 0.5
  %v18 = vmul.f32 %v8, %v16
  %v19 = vmul.f32 %v9, %v17
  %20 = vst [vmem:[%s1] sm:$0xff] %v18
  %21 = vst [vmem:[%s1 + $0x8] sm:$0xff] %v19
  // Predicated region
  $region6: #{swish_pallas.1} parent=0 // pred_check
    _
  $region7: #{swish_pallas.1} parent=0 // pred_check_branch
    %23 = sbr.rel (0) target = $region9
  $region8: #{swish_pallas.1} parent=0 // pred_region
    _
  $region9: #{swish_pallas.1} parent=0 // pred_fallthru
    _
  // Predicated region
  $region10: #{swish_pallas.1} parent=0 // pred_check
    _
  $region11: #{swish_pallas.1} parent=0 // pred_check_branch
    %25 = sbr.rel (0) target = $region13
  $region12: #{swish_pallas.1} parent=0 // pred_region
    _
  $region13: #{swish_pallas.1} parent=0 // pred_fallthru
    _

</llo_original>
